<compile_context>
chip_gen: v6e
topology: v6e:2x2x1
jax: 0.10.0
libtpu: 0.0.40
codegen_flags: <defaults>
</compile_context>

<pallas_src>
import functools

import jax
import jax.numpy as jnp
from jax.experimental import pallas as pl
from jax.experimental.pallas import tpu as pltpu


def _sigmoid(x):
    return 1.0 / (1.0 + jnp.exp(-x))


# ------------------------------- kernel ------------------------------------ #

def attn_lstm_kernel(q_ref, s_ref, st_ref, wih_t_ref, whh_t_ref, b_ref,
                     o_ref, h_hat_s, c_s, xw_s):
    """One unrolling step for one query tile.

    q_ref:     [tq, D]   query tile (constant across the step axis)
    s_ref:     [S,  D]   support set
    st_ref:    [D,  S]   support set, pre-transposed
    wih_t_ref: [D, 4D]   LSTMCell weight_ih^T
    whh_t_ref: [D, 4D]   LSTMCell weight_hh^T
    b_ref:     [1, 4D]   bias_ih + bias_hh
    o_ref:     [tq, D]   output h = h_hat + queries (written at the last step)
    scratch:   h_hat_s [tq,D], c_s [tq,D], xw_s [tq,4D]  (persist across steps)
    """
    k = pl.program_id(1)
    q = q_ref[...]                                   # [tq, D]
    D = q.shape[1]

    @pl.when(k == 0)
    def _init():
        h_hat_s[...] = jnp.zeros_like(h_hat_s)
        c_s[...] = jnp.zeros_like(c_s)
        # Input->hidden contribution is identical for every unrolling step.
        xw_s[...] = (jnp.dot(q, wih_t_ref[...],
                             preferred_element_type=jnp.float32)
                     + b_ref[...])

    # ---- attention over the support set (read-out) ----
    h = h_hat_s[...] + q                                             # [tq, D]
    logits = jnp.dot(h, st_ref[...],
                     preferred_element_type=jnp.float32)             # [tq, S]
    logits = logits - jnp.max(logits, axis=1, keepdims=True)         # stable softmax
    p = jnp.exp(logits)                                              # EUP
    attn = p / jnp.sum(p, axis=1, keepdims=True)
    readout = jnp.dot(attn, s_ref[...],
                      preferred_element_type=jnp.float32)            # [tq, D]

    # ---- LSTM cell: x = queries, h_prev = h + readout, c_prev = c ----
    h_prev = h + readout
    gates = xw_s[...] + jnp.dot(h_prev, whh_t_ref[...],
                                preferred_element_type=jnp.float32)  # [tq, 4D]
    # PyTorch gate order: i, f, g, o  (D=128 -> lane-aligned static slices)
    i_g = _sigmoid(gates[:, 0:D])
    f_g = _sigmoid(gates[:, D:2 * D])
    g_g = jnp.tanh(gates[:, 2 * D:3 * D])
    o_g = _sigmoid(gates[:, 3 * D:4 * D])
    c_new = f_g * c_s[...] + i_g * g_g
    h_hat_new = o_g * jnp.tanh(c_new)
    c_s[...] = c_new
    h_hat_s[...] = h_hat_new

    @pl.when(k == pl.num_programs(1) - 1)
    def _final():
        o_ref[...] = h_hat_new + q                   # returned h


# ------------------------------- wrapper ------------------------------------ #

def attention_lstm_forward(support, queries, params, *, unrolling_steps,
                           q_tile=8):
    """Equivalent of AttentionLSTM.forward (f32 on TPU instead of .cuda().double())."""
    if support.shape[-1] != queries.shape[-1]:
        raise ValueError('Support and query set have different embedding dimension!')
    if unrolling_steps == 0:
        return queries.astype(jnp.float32)

    Q, D = queries.shape
    S, _ = support.shape
    tq = q_tile if (Q % q_tile == 0) else Q          # block must tile or equal Q
    nq = Q // tq

    # Plain-JAX glue: pre-transpose weights/support, pre-sum the two biases.
    w_ih = params['lstm_cell.weight_ih']             # [4D, D] (PyTorch layout)
    w_hh = params['lstm_cell.weight_hh']             # [4D, D]
    bias = (params['lstm_cell.bias_ih'] + params['lstm_cell.bias_hh']).reshape(1, 4 * D)
    wih_t = jnp.transpose(w_ih).astype(jnp.float32)  # [D, 4D]
    whh_t = jnp.transpose(w_hh).astype(jnp.float32)  # [D, 4D]
    sup = support.astype(jnp.float32)                # [S, D]
    sup_t = jnp.transpose(sup)                       # [D, S]
    qf = queries.astype(jnp.float32)
    bias = bias.astype(jnp.float32)

    def _fixed(shape):
        return pl.BlockSpec(shape, lambda qi, k, _nd=len(shape): (0,) * _nd)

    out = pl.pallas_call(
        attn_lstm_kernel,
        grid=(nq, unrolling_steps),
        in_specs=[
            pl.BlockSpec((tq, D), lambda qi, k: (qi, 0)),   # queries tile
            _fixed((S, D)),                                 # support
            _fixed((D, S)),                                 # support^T
            _fixed((D, 4 * D)),                             # W_ih^T
            _fixed((D, 4 * D)),                             # W_hh^T
            _fixed((1, 4 * D)),                             # bias
        ],
        out_specs=pl.BlockSpec((tq, D), lambda qi, k: (qi, 0)),
        out_shape=jax.ShapeDtypeStruct((Q, D), jnp.float32),
        scratch_shapes=[
            pltpu.VMEM((tq, D), jnp.float32),               # h_hat
            pltpu.VMEM((tq, D), jnp.float32),               # c
            pltpu.VMEM((tq, 4 * D), jnp.float32),           # queries @ W_ih^T + b
        ],
        compiler_params=pltpu.CompilerParams(
            dimension_semantics=("parallel", "arbitrary")),
    )(qf, sup, sup_t, wih_t, whh_t, bias)
    return out


# --------------------------- pure-JAX reference ----------------------------- #

def attention_lstm_ref(support, queries, params, unrolling_steps):
    Q, D = queries.shape
    w_ih = params['lstm_cell.weight_ih']
    w_hh = params['lstm_cell.weight_hh']
    b = params['lstm_cell.bias_ih'] + params['lstm_cell.bias_hh']
    h_hat = jnp.zeros_like(queries)
    c = jnp.zeros((Q, D), queries.dtype)
    for _ in range(unrolling_steps):
        h = h_hat + queries
        attn = jax.nn.softmax(h @ support.T, axis=1)
        readout = attn @ support
        h_prev = h + readout
        gates = queries @ w_ih.T + h_prev @ w_hh.T + b
        i = jax.nn.sigmoid(gates[:, :D])
        f = jax.nn.sigmoid(gates[:, D:2 * D])
        g = jnp.tanh(gates[:, 2 * D:3 * D])
        o = jax.nn.sigmoid(gates[:, 3 * D:])
        c = f * c + i * g
        h_hat = o * jnp.tanh(c)
    return h_hat + queries


# ---------------------------------- demo ------------------------------------ #

if __name__ == "__main__":
    key = jax.random.PRNGKey(0)
    k_wih, k_whh, k_bih, k_bhh, k_sup, k_qry = jax.random.split(key, 6)

    D = 128               # embedding size (lane-dense)
    Q = 16                # number of query embeddings
    S = 32                # number of support embeddings
    T = 2                 # unrolling steps

    scale = 1.0 / (D ** 0.5)   # PyTorch LSTMCell default init range
    params = {
        'lstm_cell.weight_ih': jax.random.uniform(k_wih, (4 * D, D), jnp.float32, -scale, scale),
        'lstm_cell.weight_hh': jax.random.uniform(k_whh, (4 * D, D), jnp.float32, -scale, scale),
        'lstm_cell.bias_ih':   jax.random.uniform(k_bih, (4 * D,), jnp.float32, -scale, scale),
        'lstm_cell.bias_hh':   jax.random.uniform(k_bhh, (4 * D,), jnp.float32, -scale, scale),
    }
    support = jax.random.normal(k_sup, (S, D), jnp.float32)
    queries = jax.random.normal(k_qry, (Q, D), jnp.float32)

    fwd = jax.jit(functools.partial(attention_lstm_forward, unrolling_steps=T))
    out = fwd(support, queries, params)
    out = jax.block_until_ready(out)

    assert out.shape == (Q, D), out.shape
    assert bool(jnp.all(jnp.isfinite(out)))

    ref = attention_lstm_ref(support, queries, params, T)
    max_err = float(jnp.max(jnp.abs(out - ref)))
    assert max_err < 2e-3, f"max abs err vs reference: {max_err}"

    print("KERNEL_OK")
</pallas_src>

<mosaic_0001>
module attributes {stable_mosaic.version = 11 : i64} {
  func.func @attn_lstm_kernel(%arg0: i32, %arg1: i32, %arg2: memref<8x128xf32, #tpu.memory_space<vmem>>, %arg3: memref<32x128xf32, #tpu.memory_space<vmem>>, %arg4: memref<128x32xf32, #tpu.memory_space<vmem>>, %arg5: memref<128x512xf32, #tpu.memory_space<vmem>>, %arg6: memref<128x512xf32, #tpu.memory_space<vmem>>, %arg7: memref<1x512xf32, #tpu.memory_space<vmem>>, %arg8: memref<8x128xf32, #tpu.memory_space<vmem>>, %arg9: memref<8x128xf32, #tpu.memory_space<vmem>>, %arg10: memref<8x128xf32, #tpu.memory_space<vmem>>, %arg11: memref<8x512xf32, #tpu.memory_space<vmem>>) attributes {dimension_semantics = [#tpu.dimension_semantics<parallel>, #tpu.dimension_semantics<arbitrary>], iteration_bounds = array<i64: 2, 2>, scalar_prefetch = 0 : i64, scratch_operands = 3 : i64, tpu.core_type = #tpu.core_type<tc>, window_params = [{transform_indices = @transform_0, window_bounds = array<i64: 8, 128>}, {pipeline_mode = #tpu.pipeline_mode<synchronous>, transform_indices = @transform_1, window_bounds = array<i64: 32, 128>}, {pipeline_mode = #tpu.pipeline_mode<synchronous>, transform_indices = @transform_2, window_bounds = array<i64: 128, 32>}, {pipeline_mode = #tpu.pipeline_mode<synchronous>, transform_indices = @transform_3, window_bounds = array<i64: 128, 512>}, {pipeline_mode = #tpu.pipeline_mode<synchronous>, transform_indices = @transform_4, window_bounds = array<i64: 128, 512>}, {pipeline_mode = #tpu.pipeline_mode<synchronous>, transform_indices = @transform_5, window_bounds = array<i64: 1, 512>}, {transform_indices = @transform_6, window_bounds = array<i64: 8, 128>}]} {
    %c0 = arith.constant 0 : index
    %c0_0 = arith.constant 0 : index
    %0 = vector.load %arg2[%c0, %c0_0] : memref<8x128xf32, #tpu.memory_space<vmem>>, vector<8x128xf32>
    %c0_i32 = arith.constant 0 : i32
    %1 = arith.cmpi eq, %arg1, %c0_i32 : i32
    %2 = arith.extui %1 : i1 to i32
    %c0_i32_1 = arith.constant 0 : i32
    %3 = arith.cmpi ne, %2, %c0_i32_1 : i32
    scf.if %3 {
      %cst_32 = arith.constant 0.000000e+00 : f32
      %61 = vector.broadcast %cst_32 : f32 to vector<8x128xf32>
      %c0_33 = arith.constant 0 : index
      %c0_34 = arith.constant 0 : index
      %62 = vector.load %arg9[%c0_33, %c0_34] : memref<8x128xf32, #tpu.memory_space<vmem>>, vector<8x128xf32>
      tpu.vector_store %arg9[%c0_33, %c0_34], %61 {strides = array<i32>} : memref<8x128xf32, #tpu.memory_space<vmem>>, vector<8x128xf32>,
      %cst_35 = arith.constant 0.000000e+00 : f32
      %63 = vector.broadcast %cst_35 : f32 to vector<8x128xf32>
      %c0_36 = arith.constant 0 : index
      %c0_37 = arith.constant 0 : index
      %64 = vector.load %arg10[%c0_36, %c0_37] : memref<8x128xf32, #tpu.memory_space<vmem>>, vector<8x128xf32>
      tpu.vector_store %arg10[%c0_36, %c0_37], %63 {strides = array<i32>} : memref<8x128xf32, #tpu.memory_space<vmem>>, vector<8x128xf32>,
      %c0_38 = arith.constant 0 : index
      %c0_39 = arith.constant 0 : index
      %65 = vector.load %arg5[%c0_38, %c0_39] : memref<128x512xf32, #tpu.memory_space<vmem>>, vector<128x512xf32>
      %cst_40 = arith.constant dense<0.000000e+00> : vector<8x512xf32>
      %66 = tpu.matmul %0, %65, %cst_40 {dimension_numbers = #tpu.dot_dimension_numbers<[1], [0], [0], [1], [0, 0, 1, 1], [], []>} : vector<8x128xf32>, vector<128x512xf32>, vector<8x512xf32> -> vector<8x512xf32>
      %c0_41 = arith.constant 0 : index
      %c0_42 = arith.constant 0 : index
      %67 = vector.load %arg7[%c0_41, %c0_42] : memref<1x512xf32, #tpu.memory_space<vmem>>, vector<1x512xf32>
      %68 = vector.broadcast %67 : vector<1x512xf32> to vector<8x512xf32>
      %69 = arith.addf %66, %68 : vector<8x512xf32>
      %c0_43 = arith.constant 0 : index
      %c0_44 = arith.constant 0 : index
      %70 = vector.load %arg11[%c0_43, %c0_44] : memref<8x512xf32, #tpu.memory_space<vmem>>, vector<8x512xf32>
      tpu.vector_store %arg11[%c0_43, %c0_44], %69 {strides = array<i32>} : memref<8x512xf32, #tpu.memory_space<vmem>>, vector<8x512xf32>,
    } else {
    }
    %c0_2 = arith.constant 0 : index
    %c0_3 = arith.constant 0 : index
    %4 = vector.load %arg9[%c0_2, %c0_3] : memref<8x128xf32, #tpu.memory_space<vmem>>, vector<8x128xf32>
    %5 = arith.addf %4, %0 : vector<8x128xf32>
    %c0_4 = arith.constant 0 : index
    %c0_5 = arith.constant 0 : index
    %6 = vector.load %arg4[%c0_4, %c0_5] : memref<128x32xf32, #tpu.memory_space<vmem>>, vector<128x32xf32>
    %cst = arith.constant dense<0.000000e+00> : vector<8x32xf32>
    %7 = tpu.matmul %5, %6, %cst {dimension_numbers = #tpu.dot_dimension_numbers<[1], [0], [0], [1], [0, 0, 1, 1], [], []>} : vector<8x128xf32>, vector<128x32xf32>, vector<8x32xf32> -> vector<8x32xf32>
    %cst_6 = arith.constant dense<0xFF800000> : vector<8xf32>
    %8 = vector.multi_reduction <maximumf>, %7, %cst_6 [1] : vector<8x32xf32> to vector<8xf32>
    %9 = vector.shape_cast %8 : vector<8xf32> to vector<8x1xf32>
    %10 = vector.broadcast %9 : vector<8x1xf32> to vector<8x32xf32>
    %11 = arith.subf %7, %10 : vector<8x32xf32>
    %12 = math.exp %11 : vector<8x32xf32>
    %cst_7 = arith.constant dense<0.000000e+00> : vector<8xf32>
    %13 = vector.multi_reduction <add>, %12, %cst_7 [1] : vector<8x32xf32> to vector<8xf32>
    %14 = vector.shape_cast %13 : vector<8xf32> to vector<8x1xf32>
    %15 = vector.broadcast %14 : vector<8x1xf32> to vector<8x32xf32>
    %16 = arith.divf %12, %15 : vector<8x32xf32>
    %c0_8 = arith.constant 0 : index
    %c0_9 = arith.constant 0 : index
    %17 = vector.load %arg3[%c0_8, %c0_9] : memref<32x128xf32, #tpu.memory_space<vmem>>, vector<32x128xf32>
    %cst_10 = arith.constant dense<0.000000e+00> : vector<8x128xf32>
    %18 = tpu.matmul %16, %17, %cst_10 {dimension_numbers = #tpu.dot_dimension_numbers<[1], [0], [0], [1], [0, 0, 1, 1], [], []>} : vector<8x32xf32>, vector<32x128xf32>, vector<8x128xf32> -> vector<8x128xf32>
    %19 = arith.addf %5, %18 : vector<8x128xf32>
    %c0_11 = arith.constant 0 : index
    %c0_12 = arith.constant 0 : index
    %20 = vector.load %arg11[%c0_11, %c0_12] : memref<8x512xf32, #tpu.memory_space<vmem>>, vector<8x512xf32>
    %c0_13 = arith.constant 0 : index
    %c0_14 = arith.constant 0 : index
    %21 = vector.load %arg6[%c0_13, %c0_14] : memref<128x512xf32, #tpu.memory_space<vmem>>, vector<128x512xf32>
    %cst_15 = arith.constant dense<0.000000e+00> : vector<8x512xf32>
    %22 = tpu.matmul %19, %21, %cst_15 {dimension_numbers = #tpu.dot_dimension_numbers<[1], [0], [0], [1], [0, 0, 1, 1], [], []>} : vector<8x128xf32>, vector<128x512xf32>, vector<8x512xf32> -> vector<8x512xf32>
    %23 = arith.addf %20, %22 : vector<8x512xf32>
    %24 = vector.extract_strided_slice %23 {offsets = [0, 0], sizes = [8, 128], strides = [1, 1]} : vector<8x512xf32> to vector<8x128xf32>
    %cst_16 = arith.constant 0.000000e+00 : f32
    %25 = vector.broadcast %cst_16 : f32 to vector<8x128xf32>
    %26 = arith.subf %25, %24 : vector<8x128xf32>
    %27 = math.exp %26 : vector<8x128xf32>
    %cst_17 = arith.constant 1.000000e+00 : f32
    %28 = vector.broadcast %cst_17 : f32 to vector<8x128xf32>
    %29 = arith.addf %28, %27 : vector<8x128xf32>
    %cst_18 = arith.constant 1.000000e+00 : f32
    %30 = vector.broadcast %cst_18 : f32 to vector<8x128xf32>
    %31 = arith.divf %30, %29 : vector<8x128xf32>
    %32 = vector.extract_strided_slice %23 {offsets = [0, 128], sizes = [8, 128], strides = [1, 1]} : vector<8x512xf32> to vector<8x128xf32>
    %cst_19 = arith.constant 0.000000e+00 : f32
    %33 = vector.broadcast %cst_19 : f32 to vector<8x128xf32>
    %34 = arith.subf %33, %32 : vector<8x128xf32>
    %35 = math.exp %34 : vector<8x128xf32>
    %cst_20 = arith.constant 1.000000e+00 : f32
    %36 = vector.broadcast %cst_20 : f32 to vector<8x128xf32>
    %37 = arith.addf %36, %35 : vector<8x128xf32>
    %cst_21 = arith.constant 1.000000e+00 : f32
    %38 = vector.broadcast %cst_21 : f32 to vector<8x128xf32>
    %39 = arith.divf %38, %37 : vector<8x128xf32>
    %40 = vector.extract_strided_slice %23 {offsets = [0, 256], sizes = [8, 128], strides = [1, 1]} : vector<8x512xf32> to vector<8x128xf32>
    %41 = math.tanh %40 : vector<8x128xf32>
    %42 = vector.extract_strided_slice %23 {offsets = [0, 384], sizes = [8, 128], strides = [1, 1]} : vector<8x512xf32> to vector<8x128xf32>
    %cst_22 = arith.constant 0.000000e+00 : f32
    %43 = vector.broadcast %cst_22 : f32 to vector<8x128xf32>
    %44 = arith.subf %43, %42 : vector<8x128xf32>
    %45 = math.exp %44 : vector<8x128xf32>
    %cst_23 = arith.constant 1.000000e+00 : f32
    %46 = vector.broadcast %cst_23 : f32 to vector<8x128xf32>
    %47 = arith.addf %46, %45 : vector<8x128xf32>
    %cst_24 = arith.constant 1.000000e+00 : f32
    %48 = vector.broadcast %cst_24 : f32 to vector<8x128xf32>
    %49 = arith.divf %48, %47 : vector<8x128xf32>
    %c0_25 = arith.constant 0 : index
    %c0_26 = arith.constant 0 : index
    %50 = vector.load %arg10[%c0_25, %c0_26] : memref<8x128xf32, #tpu.memory_space<vmem>>, vector<8x128xf32>
    %51 = arith.mulf %39, %50 : vector<8x128xf32>
    %52 = arith.mulf %31, %41 : vector<8x128xf32>
    %53 = arith.addf %51, %52 : vector<8x128xf32>
    %54 = math.tanh %53 : vector<8x128xf32>
    %55 = arith.mulf %49, %54 : vector<8x128xf32>
    %c0_27 = arith.constant 0 : index
    %c0_28 = arith.constant 0 : index
    %56 = vector.load %arg10[%c0_27, %c0_28] : memref<8x128xf32, #tpu.memory_space<vmem>>, vector<8x128xf32>
    tpu.vector_store %arg10[%c0_27, %c0_28], %53 {strides = array<i32>} : memref<8x128xf32, #tpu.memory_space<vmem>>, vector<8x128xf32>,
    %c0_29 = arith.constant 0 : index
    %c0_30 = arith.constant 0 : index
    %57 = vector.load %arg9[%c0_29, %c0_30] : memref<8x128xf32, #tpu.memory_space<vmem>>, vector<8x128xf32>
    tpu.vector_store %arg9[%c0_29, %c0_30], %55 {strides = array<i32>} : memref<8x128xf32, #tpu.memory_space<vmem>>, vector<8x128xf32>,
    %c1_i32 = arith.constant 1 : i32
    %58 = arith.cmpi eq, %arg1, %c1_i32 : i32
    %59 = arith.extui %58 : i1 to i32
    %c0_i32_31 = arith.constant 0 : i32
    %60 = arith.cmpi ne, %59, %c0_i32_31 : i32
    scf.if %60 {
      %61 = arith.addf %55, %0 : vector<8x128xf32>
      %c0_32 = arith.constant 0 : index
      %c0_33 = arith.constant 0 : index
      %62 = vector.load %arg8[%c0_32, %c0_33] : memref<8x128xf32, #tpu.memory_space<vmem>>, vector<8x128xf32>
      tpu.vector_store %arg8[%c0_32, %c0_33], %61 {strides = array<i32>} : memref<8x128xf32, #tpu.memory_space<vmem>>, vector<8x128xf32>,
    } else {
    }
    return
  }
  func.func @transform_0(%arg0: i32, %arg1: i32) -> (i32, i32) {
    %c0_i32 = arith.constant 0 : i32
    %c0_i32_0 = arith.constant 0 : i32
    return %arg0, %c0_i32 : i32, i32
  }
  func.func @transform_1(%arg0: i32, %arg1: i32) -> (i32, i32) {
    %c0_i32 = arith.constant 0 : i32
    %c0_i32_0 = arith.constant 0 : i32
    %c0_i32_1 = arith.constant 0 : i32
    return %c0_i32, %c0_i32_0 : i32, i32
  }
  func.func @transform_2(%arg0: i32, %arg1: i32) -> (i32, i32) {
    %c0_i32 = arith.constant 0 : i32
    %c0_i32_0 = arith.constant 0 : i32
    %c0_i32_1 = arith.constant 0 : i32
    return %c0_i32, %c0_i32_0 : i32, i32
  }
  func.func @transform_3(%arg0: i32, %arg1: i32) -> (i32, i32) {
    %c0_i32 = arith.constant 0 : i32
    %c0_i32_0 = arith.constant 0 : i32
    %c0_i32_1 = arith.constant 0 : i32
    return %c0_i32, %c0_i32_0 : i32, i32
  }
  func.func @transform_4(%arg0: i32, %arg1: i32) -> (i32, i32) {
    %c0_i32 = arith.constant 0 : i32
    %c0_i32_0 = arith.constant 0 : i32
    %c0_i32_1 = arith.constant 0 : i32
    return %c0_i32, %c0_i32_0 : i32, i32
  }
  func.func @transform_5(%arg0: i32, %arg1: i32) -> (i32, i32) {
    %c0_i32 = arith.constant 0 : i32
    %c0_i32_0 = arith.constant 0 : i32
    %c0_i32_1 = arith.constant 0 : i32
    return %c0_i32, %c0_i32_0 : i32, i32
  }
  func.func @transform_6(%arg0: i32, %arg1: i32) -> (i32, i32) {
    %c0_i32 = arith.constant 0 : i32
    %c0_i32_0 = arith.constant 0 : i32
    return %arg0, %c0_i32 : i32, i32
  }
}

</mosaic_0001>

<llo_original>
// kernel: attention_lstm_forward.1
$region0: #{attention_lstm_forward.1}
  #allocation0 [shape = 'u32[]', space=smem, size = 0x4, offset = 0x4, fixed_abs, tag = 'smem constant byte address 0x4 - core index']
  #allocation1 [shape = 'u32[144,128]{1,0:T(1,128)}', space=vmem, size = 0x12000, scoped, tag = 'internal scratch']
  #allocation2 [shape = 'f32[8,128]{1,0:T(8,128)}', space=vmem, size = 0x1000, scoped, tag = 'scratch operand']
  #allocation3 [shape = 'f32[8,128]{1,0:T(8,128)}', space=vmem, size = 0x1000, scoped, tag = 'scratch operand']
  #allocation4 [shape = 'f32[8,512]{1,0:T(8,128)}', space=vmem, size = 0x4000, scoped, tag = 'scratch operand']
  %s0 = inlined_call_operand.vmem [shape: f32[16,128], index: 0, kind: input, shape index: {}]
  %s1 = inlined_call_operand.vmem [shape: f32[32,128], index: 1, kind: input, shape index: {}]
  %s2 = inlined_call_operand.vmem [shape: f32[128,32], index: 2, kind: input, shape index: {}]
  %s3 = inlined_call_operand.vmem [shape: f32[128,512], index: 3, kind: input, shape index: {}]
  %s4 = inlined_call_operand.vmem [shape: f32[128,512], index: 4, kind: input, shape index: {}]
  %s5 = inlined_call_operand.vmem [shape: f32[1,512], index: 5, kind: input, shape index: {}]
  %s6 = inlined_call_operand.hbm [shape: f32[16,128], index: 6, kind: output, shape index: {}]
  %s7 = sld [smem:[#allocation0]]
  $region65: #{attention_lstm_forward.1} parent=0
    _
  %s9 = ssub.s32 1, %s7
  %s10 = scalar_select 0, %s9, %s7
  $region1: #{attention_lstm_forward.1} parent=0
    #allocation5 [shape = 'u8[8192]{0}', space=vmem, size = 0x2000, scoped, tag = 'output window, operand 0']
    #allocation6 [shape = 's32[2]{0}', space=sflag, size = 0x8, scoped, tag = 'scoped memory for attention_lstm_forward.1']
    %11 = vsyncpa [#allocation6], 0
    %s12 = scalar_lea.sflag [#allocation6], 1
    %13 = vsyncpa %s12, 0
    loop: start=0, step=1, limit=6
    $region2: #{attention_lstm_forward.1} parent=1 // loop_pre_header
      _
    $region3: #{attention_lstm_forward.1} parent=1 // loop_header
      %s15 = sphi 0, %s19
      %p16 = scmp.ge.s32.totalorder %s15, 6
      %s22 = sphi 0, %s34
      %s23 = sphi 0, %s30
      %s24 = sphi 0, %s22
      %s25 = sphi 0, %s23
      %s26 = sphi 0, %s24
      %s27 = sphi 0, %s25
      %s37 = sphi 0, %s39
      %s40 = sphi 0, %s37
      %s41 = sphi 0, %s40
      %s57 = sphi 0, %s41
      %s61 = sphi 0, %s61
      %s63 = sphi 0, %s61
      %s64 = sphi 0, %s63
      %s78 = sphi 0, %s64
      %s82 = sphi 0, %s82
      %s84 = sphi 0, %s82
      %s85 = sphi 0, %s84
      %s99 = sphi 0, %s85
      %s103 = sphi 0, %s103
      %s105 = sphi 0, %s103
      %s106 = sphi 0, %s105
      %s120 = sphi 0, %s106
      %s124 = sphi 0, %s124
      %s126 = sphi 0, %s124
      %s127 = sphi 0, %s126
      %s141 = sphi 0, %s127
      %s145 = sphi 0, %s145
      %s147 = sphi 0, %s145
      %s148 = sphi 0, %s147
      %s162 = sphi 0, %s148
      %s168 = sphi 0, %s170
      %s171 = sphi 0, %s168
      %s172 = sphi 0, %s171
      %s188 = sphi 0, %s172
    $region4: #{attention_lstm_forward.1} parent=1 // loop_header_branch
      %18 = sbr.rel (%p16) target = $region8
    $region5: #{attention_lstm_forward.1} parent=1 // loop_body
      %s20 = ssub.s32 %s15, 1
      %s21 = ssub.s32 %s15, 2
      %s28 = sadd.s32 1, %s23
      %p29 = scmp.ge.s32.totalorder %s28, 2
      %s30 = scalar_select %p29, 0, %s28
      %s31 = sadd.s32 1, %s22
      %s32 = scalar_select %p29, %s31, %s22
      %p33 = scmp.ge.s32.totalorder %s32, 2
      %s34 = scalar_select %p33, 0, %s32
      %s35 = ssub.s32 %s22, %s34
      %p36 = scmp.eq.s32.totalorder %s35, 0
      %s38 = sadd.s32 %s37, 1
      %s39 = scalar_select %p36, %s37, %s38
      %p42 = pneg %p36
      %p43 = scmp.eq.s32.totalorder %s15, 3
      %p44 = por %p42, %p43
      %p45 = scmp.ne.s32.totalorder %s37, %s40
      %p46 = scmp.eq.s32.totalorder %s15, 0
      %p47 = por %p45, %p46
      %p48 = scmp.ne.s32.totalorder %s37, %s40
      %p49 = scmp.eq.s32.totalorder %s20, 3
      %p50 = por %p48, %p49
      %p51 = scmp.ne.s32.totalorder %s40, %s41
      %p52 = scmp.eq.s32.totalorder %s20, 0
      %p53 = por %p51, %p52
      %p54 = scmp.ne.s32.totalorder %s40, %s41
      %p55 = scmp.eq.s32.totalorder %s21, 3
      %p56 = por %p54, %p55
      %p58 = scmp.ne.s32.totalorder %s41, %s57
      %p59 = scmp.eq.s32.totalorder %s21, 0
      %p60 = por %p58, %p59
      %s62 = sadd.s32 %s61, 1
      %p65 = scmp.eq.s32.totalorder %s15, 3
      %p66 = scmp.ne.s32.totalorder %s61, %s63
      %p67 = scmp.eq.s32.totalorder %s15, 0
      %p68 = por %p66, %p67
      %p69 = scmp.ne.s32.totalorder %s61, %s63
      %p70 = scmp.eq.s32.totalorder %s20, 3
      %p71 = por %p69, %p70
      %p72 = scmp.ne.s32.totalorder %s63, %s64
      %p73 = scmp.eq.s32.totalorder %s20, 0
      %p74 = por %p72, %p73
      %p75 = scmp.ne.s32.totalorder %s63, %s64
      %p76 = scmp.eq.s32.totalorder %s21, 3
      %p77 = por %p75, %p76
      %p79 = scmp.ne.s32.totalorder %s64, %s78
      %p80 = scmp.eq.s32.totalorder %s21, 0
      %p81 = por %p79, %p80
      %s83 = sadd.s32 %s82, 1
      %p86 = scmp.eq.s32.totalorder %s15, 3
      %p87 = scmp.ne.s32.totalorder %s82, %s84
      %p88 = scmp.eq.s32.totalorder %s15, 0
      %p89 = por %p87, %p88
      %p90 = scmp.ne.s32.totalorder %s82, %s84
      %p91 = scmp.eq.s32.totalorder %s20, 3
      %p92 = por %p90, %p91
      %p93 = scmp.ne.s32.totalorder %s84, %s85
      %p94 = scmp.eq.s32.totalorder %s20, 0
      %p95 = por %p93, %p94
      %p96 = scmp.ne.s32.totalorder %s84, %s85
      %p97 = scmp.eq.s32.totalorder %s21, 3
      %p98 = por %p96, %p97
      %p100 = scmp.ne.s32.totalorder %s85, %s99
      %p101 = scmp.eq.s32.totalorder %s21, 0
      %p102 = por %p100, %p101
      %s104 = sadd.s32 %s103, 1
      %p107 = scmp.eq.s32.totalorder %s15, 3
      %p108 = scmp.ne.s32.totalorder %s103, %s105
      %p109 = scmp.eq.s32.totalorder %s15, 0
      %p110 = por %p108, %p109
      %p111 = scmp.ne.s32.totalorder %s103, %s105
      %p112 = scmp.eq.s32.totalorder %s20, 3
      %p113 = por %p111, %p112
      %p114 = scmp.ne.s32.totalorder %s105, %s106
      %p115 = scmp.eq.s32.totalorder %s20, 0
      %p116 = por %p114, %p115
      %p117 = scmp.ne.s32.totalorder %s105, %s106
      %p118 = scmp.eq.s32.totalorder %s21, 3
      %p119 = por %p117, %p118
      %p121 = scmp.ne.s32.totalorder %s106, %s120
      %p122 = scmp.eq.s32.totalorder %s21, 0
      %p123 = por %p121, %p122
      %s125 = sadd.s32 %s124, 1
      %p128 = scmp.eq.s32.totalorder %s15, 3
      %p129 = scmp.ne.s32.totalorder %s124, %s126
      %p130 = scmp.eq.s32.totalorder %s15, 0
      %p131 = por %p129, %p130
      %p132 = scmp.ne.s32.totalorder %s124, %s126
      %p133 = scmp.eq.s32.totalorder %s20, 3
      %p134 = por %p132, %p133
      %p135 = scmp.ne.s32.totalorder %s126, %s127
      %p136 = scmp.eq.s32.totalorder %s20, 0
      %p137 = por %p135, %p136
      %p138 = scmp.ne.s32.totalorder %s126, %s127
      %p139 = scmp.eq.s32.totalorder %s21, 3
      %p140 = por %p138, %p139
      %p142 = scmp.ne.s32.totalorder %s127, %s141
      %p143 = scmp.eq.s32.totalorder %s21, 0
      %p144 = por %p142, %p143
      %s146 = sadd.s32 %s145, 1
      %p149 = scmp.eq.s32.totalorder %s15, 3
      %p150 = scmp.ne.s32.totalorder %s145, %s147
      %p151 = scmp.eq.s32.totalorder %s15, 0
      %p152 = por %p150, %p151
      %p153 = scmp.ne.s32.totalorder %s145, %s147
      %p154 = scmp.eq.s32.totalorder %s20, 3
      %p155 = por %p153, %p154
      %p156 = scmp.ne.s32.totalorder %s147, %s148
      %p157 = scmp.eq.s32.totalorder %s20, 0
      %p158 = por %p156, %p157
      %p159 = scmp.ne.s32.totalorder %s147, %s148
      %p160 = scmp.eq.s32.totalorder %s21, 3
      %p161 = por %p159, %p160
      %p163 = scmp.ne.s32.totalorder %s148, %s162
      %p164 = scmp.eq.s32.totalorder %s21, 0
      %p165 = por %p163, %p164
      %s166 = ssub.s32 %s22, %s34
      %p167 = scmp.eq.s32.totalorder %s166, 0
      %s169 = sadd.s32 %s168, 1
      %s170 = scalar_select %p167, %s168, %s169
      %p173 = pneg %p167
      %p174 = scmp.eq.s32.totalorder %s15, 3
      %p175 = por %p173, %p174
      %p176 = scmp.ne.s32.totalorder %s168, %s171
      %p177 = scmp.eq.s32.totalorder %s15, 0
      %p178 = por %p176, %p177
      %p179 = scmp.ne.s32.totalorder %s168, %s171
      %p180 = scmp.eq.s32.totalorder %s20, 3
      %p181 = por %p179, %p180
      %p182 = scmp.ne.s32.totalorder %s171, %s172
      %p183 = scmp.eq.s32.totalorder %s20, 0
      %p184 = por %p182, %p183
      %p185 = scmp.ne.s32.totalorder %s171, %s172
      %p186 = scmp.eq.s32.totalorder %s21, 3
      %p187 = por %p185, %p186
      %p189 = scmp.ne.s32.totalorder %s172, %s188
      %p190 = scmp.eq.s32.totalorder %s21, 0
      %p191 = por %p189, %p190
      %p192 = scmp.le.s32.totalorder 1, %s15
      %p193 = scmp.lt.s32.totalorder %s15, 5
      %p194 = pnand %p192, %p193
      %p195 = pneg %p194
      // Predicated region
      $region9: #{attention_lstm_forward.1} parent=5 // pred_check
        _
      $region10: #{attention_lstm_forward.1} parent=5 // pred_check_branch
        %197 = sbr.rel (%p194) target = $region12
      $region11: #{attention_lstm_forward.1} parent=5 // pred_region
        %s198 = ssub.s32 %s15, 1
        // Predicated region
        $region13: #{attention_lstm_forward.1} parent=11 // pred_check
          %p199 = pneg %p74
        $region14: #{attention_lstm_forward.1} parent=11 // pred_check_branch
          %201 = sbr.rel (%p199) target = $region16
        $region15: #{attention_lstm_forward.1} parent=11 // pred_region
          _
        $region16: #{attention_lstm_forward.1} parent=11 // pred_fallthru
          _
        // Predicated region
        $region17: #{attention_lstm_forward.1} parent=11 // pred_check
          %p202 = pneg %p95
        $region18: #{attention_lstm_forward.1} parent=11 // pred_check_branch
          %204 = sbr.rel (%p202) target = $region20
        $region19: #{attention_lstm_forward.1} parent=11 // pred_region
          _
        $region20: #{attention_lstm_forward.1} parent=11 // pred_fallthru
          _
        // Predicated region
        $region21: #{attention_lstm_forward.1} parent=11 // pred_check
          %p205 = pneg %p116
        $region22: #{attention_lstm_forward.1} parent=11 // pred_check_branch
          %207 = sbr.rel (%p205) target = $region24
        $region23: #{attention_lstm_forward.1} parent=11 // pred_region
          _
        $region24: #{attention_lstm_forward.1} parent=11 // pred_fallthru
          _
        // Predicated region
        $region25: #{attention_lstm_forward.1} parent=11 // pred_check
          %p208 = pneg %p137
        $region26: #{attention_lstm_forward.1} parent=11 // pred_check_branch
          %210 = sbr.rel (%p208) target = $region28
        $region27: #{attention_lstm_forward.1} parent=11 // pred_region
          _
        $region28: #{attention_lstm_forward.1} parent=11 // pred_fallthru
          _
        // Predicated region
        $region29: #{attention_lstm_forward.1} parent=11 // pred_check
          %p211 = pneg %p158
        $region30: #{attention_lstm_forward.1} parent=11 // pred_check_branch
          %213 = sbr.rel (%p211) target = $region32
        $region31: #{attention_lstm_forward.1} parent=11 // pred_region
          _
        $region32: #{attention_lstm_forward.1} parent=11 // pred_fallthru
          _
      $region12: #{attention_lstm_forward.1} parent=5 // pred_fallthru
        _
      %p214 = scmp.lt.s32.totalorder %s15, 4
      // Predicated region
      $region33: #{attention_lstm_forward.1} parent=5 // pred_check
        %p215 = pneg %p214
      $region34: #{attention_lstm_forward.1} parent=5 // pred_check_branch
        %217 = sbr.rel (%p215) target = $region36
      $region35: #{attention_lstm_forward.1} parent=5 // pred_region
        // Predicated region
        $region37: #{attention_lstm_forward.1} parent=35 // pred_check
          %p218 = pneg %p47
        $region38: #{attention_lstm_forward.1} parent=35 // pred_check_branch
          %220 = sbr.rel (%p218) target = $region40
        $region39: #{attention_lstm_forward.1} parent=35 // pred_region
          %p221 = scmp.lt.s32.totalorder %s22, 1
          %s222 = scalar_select %p221, %s22, 1
          %s223 = smul.addr %s222, 8
          %s224 = scalar_lea.vmem %s0, %s223
        $region40: #{attention_lstm_forward.1} parent=35 // pred_fallthru
          _
      $region36: #{attention_lstm_forward.1} parent=5 // pred_fallthru
        _
      %p225 = scmp.le.s32.totalorder 1, %s15
      %p226 = scmp.lt.s32.totalorder %s15, 5
      %p227 = pnand %p225, %p226
      %p228 = pneg %p227
      // Predicated region
      $region41: #{attention_lstm_forward.1} parent=5 // pred_check
        _
      $region42: #{attention_lstm_forward.1} parent=5 // pred_check_branch
        %230 = sbr.rel (%p227) target = $region44
      $region43: #{attention_lstm_forward.1} parent=5 // pred_region
        %s231 = ssub.s32 %s15, 1
        %p232 = scmp.lt.s32.totalorder %s24, 1
        %s233 = scalar_select %p232, %s24, 1
        %s234 = smul.addr %s233, 8
        %s235 = scalar_lea.vmem %s0, %s234
        %p236 = pneg %p53
        %p237 = pneg %p50
        %p238 = pneg %p74
        %p239 = pneg %p71
        %p240 = pneg %p95
        %p241 = pneg %p92
        %p242 = pneg %p116
        %p243 = pneg %p113
        %p244 = pneg %p137
        %p245 = pneg %p134
        %p246 = pneg %p158
        %p247 = pneg %p155
        %p248 = pneg %p184
        %p249 = pneg %p181
        %s250 = sand.u32 %s171, 1
        %s251 = scalar_lea.sflag [#allocation6], %s250
        %s252 = sand.u32 %s171, 1
        %s253 = smul.addr %s252, 8
        %s254 = scalar_lea.vmem [#allocation5], %s253
        %p255 = scmp.lt.s32.totalorder %s24, 1
        %s256 = scalar_select %p255, %s24, 1
        %s257 = smul.addr %s256, 8
        %s258 = scalar_lea.vmem %s0, %s257
        %v259 = vld [vmem:[%s258] sm:$0xff]
        %p260 = scmp.eq.s32.totalorder %s25, 0
        // Predicated region
        $region45: #{attention_lstm_forward.1} parent=43 // pred_check
          %p261 = pneg %p260
        $region46: #{attention_lstm_forward.1} parent=43 // pred_check_branch
          %263 = sbr.rel (%p261) target = $region48
        $region47: #{attention_lstm_forward.1} parent=43 // pred_region
          %264 = vst [vmem:[#allocation2] sm:$0xff] 0.0
          %265 = vst [vmem:[#allocation3] sm:$0xff] 0.0
          %v266 = vld [vmem:[%s3] sm:$0xff]
          %v267 = vld [vmem:[%s3 + $0x8] sm:$0xff]
          %v268 = vld [vmem:[%s3 + $0x10] sm:$0xff]
          %v269 = vld [vmem:[%s3 + $0x18] sm:$0xff]
          %v270 = vld [vmem:[%s3 + $0x20] sm:$0xff]
          %v271 = vld [vmem:[%s3 + $0x28] sm:$0xff]
          %v272 = vld [vmem:[%s3 + $0x30] sm:$0xff]
          %v273 = vld [vmem:[%s3 + $0x38] sm:$0xff]
          %v274 = vld [vmem:[%s3 + $0x40] sm:$0xff]
          %v275 = vld [vmem:[%s3 + $0x48] sm:$0xff]
          %v276 = vld [vmem:[%s3 + $0x50] sm:$0xff]
          %v277 = vld [vmem:[%s3 + $0x58] sm:$0xff]
          %v278 = vld [vmem:[%s3 + $0x60] sm:$0xff]
          %v279 = vld [vmem:[%s3 + $0x68] sm:$0xff]
          %v280 = vld [vmem:[%s3 + $0x70] sm:$0xff]
          %v281 = vld [vmem:[%s3 + $0x78] sm:$0xff]
          %v282 = vld [vmem:[%s3 + $0x80] sm:$0xff]
          %v283 = vld [vmem:[%s3 + $0x88] sm:$0xff]
          %v284 = vld [vmem:[%s3 + $0x90] sm:$0xff]
          %v285 = vld [vmem:[%s3 + $0x98] sm:$0xff]
          %v286 = vld [vmem:[%s3 + $0xa0] sm:$0xff]
          %v287 = vld [vmem:[%s3 + $0xa8] sm:$0xff]
          %v288 = vld [vmem:[%s3 + $0xb0] sm:$0xff]
          %v289 = vld [vmem:[%s3 + $0xb8] sm:$0xff]
          %v290 = vld [vmem:[%s3 + $0xc0] sm:$0xff]
          %v291 = vld [vmem:[%s3 + $0xc8] sm:$0xff]
          %v292 = vld [vmem:[%s3 + $0xd0] sm:$0xff]
          %v293 = vld [vmem:[%s3 + $0xd8] sm:$0xff]
          %v294 = vld [vmem:[%s3 + $0xe0] sm:$0xff]
          %v295 = vld [vmem:[%s3 + $0xe8] sm:$0xff]
          %v296 = vld [vmem:[%s3 + $0xf0] sm:$0xff]
          %v297 = vld [vmem:[%s3 + $0xf8] sm:$0xff]
          %v298 = vld [vmem:[%s3 + $0x100] sm:$0xff]
          %v299 = vld [vmem:[%s3 + $0x108] sm:$0xff]
          %v300 = vld [vmem:[%s3 + $0x110] sm:$0xff]
          %v301 = vld [vmem:[%s3 + $0x118] sm:$0xff]
          %v302 = vld [vmem:[%s3 + $0x120] sm:$0xff]
          %v303 = vld [vmem:[%s3 + $0x128] sm:$0xff]
          %v304 = vld [vmem:[%s3 + $0x130] sm:$0xff]
          %v305 = vld [vmem:[%s3 + $0x138] sm:$0xff]
          %v306 = vld [vmem:[%s3 + $0x140] sm:$0xff]
          %v307 = vld [vmem:[%s3 + $0x148] sm:$0xff]
          %v308 = vld [vmem:[%s3 + $0x150] sm:$0xff]
          %v309 = vld [vmem:[%s3 + $0x158] sm:$0xff]
          %v310 = vld [vmem:[%s3 + $0x160] sm:$0xff]
          %v311 = vld [vmem:[%s3 + $0x168] sm:$0xff]
          %v312 = vld [vmem:[%s3 + $0x170] sm:$0xff]
          %v313 = vld [vmem:[%s3 + $0x178] sm:$0xff]
          %v314 = vld [vmem:[%s3 + $0x180] sm:$0xff]
          %v315 = vld [vmem:[%s3 + $0x188] sm:$0xff]
          %v316 = vld [vmem:[%s3 + $0x190] sm:$0xff]
          %v317 = vld [vmem:[%s3 + $0x198] sm:$0xff]
          %v318 = vld [vmem:[%s3 + $0x1a0] sm:$0xff]
          %v319 = vld [vmem:[%s3 + $0x1a8] sm:$0xff]
          %v320 = vld [vmem:[%s3 + $0x1b0] sm:$0xff]
          %v321 = vld [vmem:[%s3 + $0x1b8] sm:$0xff]
          %v322 = vld [vmem:[%s3 + $0x1c0] sm:$0xff]
          %v323 = vld [vmem:[%s3 + $0x1c8] sm:$0xff]
          %v324 = vld [vmem:[%s3 + $0x1d0] sm:$0xff]
          %v325 = vld [vmem:[%s3 + $0x1d8] sm:$0xff]
          %v326 = vld [vmem:[%s3 + $0x1e0] sm:$0xff]
          %v327 = vld [vmem:[%s3 + $0x1e8] sm:$0xff]
          %v328 = vld [vmem:[%s3 + $0x1f0] sm:$0xff]
          %v329 = vld [vmem:[%s3 + $0x1f8] sm:$0xff]
          %v330 = vld [vmem:[%s5] sm:$0xf]
          %v332 = vlaneseq
          %v333 = vshrl.u32 %v332, 7
          %v334 = vsub.s32 0, %v333
          %v335 = vrot.slane %v330, %v334
          %v336 = vlaneseq
          %v337 = vshrl.u32 %v336, 7
          %v338 = vsub.s32 1, %v337
          %v339 = vrot.slane %v330, %v338
          %v340 = vlaneseq
          %v341 = vshrl.u32 %v340, 7
          %v342 = vsub.s32 2, %v341
          %v343 = vrot.slane %v330, %v342
          %v344 = vlaneseq
          %v345 = vshrl.u32 %v344, 7
          %v346 = vsub.s32 3, %v345
          %v347 = vrot.slane %v330, %v346
          %352 = vmatprep.subr.mxu0 %v327
          %353 = vmatpush1.msra.mxu0 %v326
          %354 = vmatprep.subr.mxu0 %v323
          %355 = vmatpush1.msra.mxu0 %v322
          %356 = vmatprep.subr.mxu0 %v319
          %357 = vmatpush1.msra.mxu0 %v318
          %358 = vmatprep.subr.mxu0 %v315
          %359 = vmatpush1.msra.mxu0 %v314
          %360 = vmatprep.subr.mxu0 %v311
          %361 = vmatpush1.msra.mxu0 %v310
          %362 = vmatprep.subr.mxu0 %v307
          %363 = vmatpush1.msra.mxu0 %v306
          %364 = vmatprep.subr.mxu0 %v303
          %365 = vmatpush1.msra.mxu0 %v302
          %366 = vmatprep.subr.mxu0 %v299
          %367 = vmatpush1.msra.mxu0 %v298
          %368 = vmatprep.subr.mxu0 %v295
          %369 = vmatpush1.msra.mxu0 %v294
          %370 = vmatprep.subr.mxu0 %v291
          %371 = vmatpush1.msra.mxu0 %v290
          %372 = vmatprep.subr.mxu0 %v287
          %373 = vmatpush1.msra.mxu0 %v286
          %374 = vmatprep.subr.mxu0 %v283
          %375 = vmatpush1.msra.mxu0 %v282
          %376 = vmatprep.subr.mxu0 %v279
          %377 = vmatpush1.msra.mxu0 %v278
          %378 = vmatprep.subr.mxu0 %v275
          %379 = vmatpush1.msra.mxu0 %v274
          %380 = vmatprep.subr.mxu0 %v271
          %381 = vmatpush1.msra.mxu0 %v270
          %382 = vmatprep.subr.mxu0 %v267
          %383 = vmatpush1.msra.mxu0 %v266
          %384 = vmatprep.subr.mxu0 0.0
          %385 = vmatpush2.msra.mxu0 0.0
          %386 = vmatprep.subr.mxu0 0.0
          %387 = vmatpush2.msra.mxu0 0.0
          %388 = vmatprep.subr.mxu0 0.0
          %389 = vmatpush2.msra.mxu0 0.0
          %390 = vmatprep.subr.mxu0 0.0
          %391 = vmatpush2.msra.mxu0 0.0
          %392 = vmatprep.subr.mxu0 0.0
          %393 = vmatpush2.msra.mxu0 0.0
          %394 = vmatprep.subr.mxu0 0.0
          %395 = vmatpush2.msra.mxu0 0.0
          %396 = vmatprep.subr.mxu0 0.0
          %397 = vmatpush2.msra.mxu0 0.0
          %398 = vmatprep.subr.mxu0 0.0
          %399 = vmatpush2.msra.mxu0 0.0
          %400 = vmatprep.subr.mxu0 0.0
          %401 = vmatpush2.msra.mxu0 0.0
          %402 = vmatprep.subr.mxu0 0.0
          %403 = vmatpush2.msra.mxu0 0.0
          %404 = vmatprep.subr.mxu0 0.0
          %405 = vmatpush2.msra.mxu0 0.0
          %406 = vmatprep.subr.mxu0 0.0
          %407 = vmatpush2.msra.mxu0 0.0
          %408 = vmatprep.subr.mxu0 0.0
          %409 = vmatpush2.msra.mxu0 0.0
          %410 = vmatprep.subr.mxu0 0.0
          %411 = vmatpush2.msra.mxu0 0.0
          %412 = vmatprep.subr.mxu0 0.0
          %413 = vmatpush2.msra.mxu0 0.0
          %414 = vmatprep.subr.mxu0 0.0
          %415 = vmatpush2.msra.mxu0 0.0
          %416 = vmatprep.mubr.f32.mxu0 0.0
          %417 = vmatmul.mubr.f32.gmra.mxu0 %v259
          %v418 = vpop.f32.mrf.mxu0
          %v419 = vadd.f32 %v335, %v418
          %v420 = vpop.f32.mrf.mxu0
          %v421 = vadd.f32 %v339, %v420
          %422 = vdwg.mxu0
          %423 = vmatprep.subr.mxu0 %v329
          %424 = vmatpush1.msra.mxu0 %v328
          %425 = vmatprep.subr.mxu0 %v325
          %426 = vmatpush1.msra.mxu0 %v324
          %427 = vmatprep.subr.mxu0 %v321
          %428 = vmatpush1.msra.mxu0 %v320
          %429 = vmatprep.subr.mxu0 %v317
          %430 = vmatpush1.msra.mxu0 %v316
          %431 = vmatprep.subr.mxu0 %v313
          %432 = vmatpush1.msra.mxu0 %v312
          %433 = vmatprep.subr.mxu0 %v309
          %434 = vmatpush1.msra.mxu0 %v308
          %435 = vmatprep.subr.mxu0 %v305
          %436 = vmatpush1.msra.mxu0 %v304
          %437 = vmatprep.subr.mxu0 %v301
          %438 = vmatpush1.msra.mxu0 %v300
          %439 = vmatprep.subr.mxu0 %v297
          %440 = vmatpush1.msra.mxu0 %v296
          %441 = vmatprep.subr.mxu0 %v293
          %442 = vmatpush1.msra.mxu0 %v292
          %443 = vmatprep.subr.mxu0 %v289
          %444 = vmatpush1.msra.mxu0 %v288
          %445 = vmatprep.subr.mxu0 %v285
          %446 = vmatpush1.msra.mxu0 %v284
          %447 = vmatprep.subr.mxu0 %v281
          %448 = vmatpush1.msra.mxu0 %v280
          %449 = vmatprep.subr.mxu0 %v277
          %450 = vmatpush1.msra.mxu0 %v276
          %451 = vmatprep.subr.mxu0 %v273
          %452 = vmatpush1.msra.mxu0 %v272
          %453 = vmatprep.subr.mxu0 %v269
          %454 = vmatpush1.msra.mxu0 %v268
          %455 = vmatprep.subr.mxu0 0.0
          %456 = vmatpush2.msra.mxu0 0.0
          %457 = vmatprep.subr.mxu0 0.0
          %458 = vmatpush2.msra.mxu0 0.0
          %459 = vmatprep.subr.mxu0 0.0
          %460 = vmatpush2.msra.mxu0 0.0
          %461 = vmatprep.subr.mxu0 0.0
          %462 = vmatpush2.msra.mxu0 0.0
          %463 = vmatprep.subr.mxu0 0.0
          %464 = vmatpush2.msra.mxu0 0.0
          %465 = vmatprep.subr.mxu0 0.0
          %466 = vmatpush2.msra.mxu0 0.0
          %467 = vmatprep.subr.mxu0 0.0
          %468 = vmatpush2.msra.mxu0 0.0
          %469 = vmatprep.subr.mxu0 0.0
          %470 = vmatpush2.msra.mxu0 0.0
          %471 = vmatprep.subr.mxu0 0.0
          %472 = vmatpush2.msra.mxu0 0.0
          %473 = vmatprep.subr.mxu0 0.0
          %474 = vmatpush2.msra.mxu0 0.0
          %475 = vmatprep.subr.mxu0 0.0
          %476 = vmatpush2.msra.mxu0 0.0
          %477 = vmatprep.subr.mxu0 0.0
          %478 = vmatpush2.msra.mxu0 0.0
          %479 = vmatprep.subr.mxu0 0.0
          %480 = vmatpush2.msra.mxu0 0.0
          %481 = vmatprep.subr.mxu0 0.0
          %482 = vmatpush2.msra.mxu0 0.0
          %483 = vmatprep.subr.mxu0 0.0
          %484 = vmatpush2.msra.mxu0 0.0
          %485 = vmatprep.subr.mxu0 0.0
          %486 = vmatpush2.msra.mxu0 0.0
          %487 = vmatprep.mubr.f32.mxu0 0.0
          %488 = vmatmul.mubr.f32.gmra.mxu0 %v259
          %v489 = vpop.f32.mrf.mxu0
          %v490 = vadd.f32 %v343, %v489
          %v491 = vpop.f32.mrf.mxu0
          %v492 = vadd.f32 %v347, %v491
          %493 = vdwg.mxu0
          %494 = vst [vmem:[#allocation4] sm:$0xff] %v419
          %495 = vst [vmem:[#allocation4 + $0x8] sm:$0xff] %v421
          %496 = vst [vmem:[#allocation4 + $0x10] sm:$0xff] %v490
          %497 = vst [vmem:[#allocation4 + $0x18] sm:$0xff] %v492
        $region48: #{attention_lstm_forward.1} parent=43 // pred_fallthru
          _
        %v498 = vld [vmem:[#allocation2] sm:$0xff]
        %v499 = vadd.f32 %v498, %v259
        %v500 = vld [vmem:[%s2] sm:$0xff]
        %v501 = vld [vmem:[%s2 + $0x8] sm:$0xff]
        %v502 = vld [vmem:[%s2 + $0x10] sm:$0xff]
        %v503 = vld [vmem:[%s2 + $0x18] sm:$0xff]
        %v504 = vld [vmem:[%s2 + $0x20] sm:$0xff]
        %v505 = vld [vmem:[%s2 + $0x28] sm:$0xff]
        %v506 = vld [vmem:[%s2 + $0x30] sm:$0xff]
        %v507 = vld [vmem:[%s2 + $0x38] sm:$0xff]
        %v508 = vld [vmem:[%s2 + $0x40] sm:$0xff]
        %v509 = vld [vmem:[%s2 + $0x48] sm:$0xff]
        %v510 = vld [vmem:[%s2 + $0x50] sm:$0xff]
        %v511 = vld [vmem:[%s2 + $0x58] sm:$0xff]
        %v512 = vld [vmem:[%s2 + $0x60] sm:$0xff]
        %v513 = vld [vmem:[%s2 + $0x68] sm:$0xff]
        %v514 = vld [vmem:[%s2 + $0x70] sm:$0xff]
        %v515 = vld [vmem:[%s2 + $0x78] sm:$0xff]
        %516 = vmatprep.subr.mxu0 0.0
        %517 = vmatpush1.msra.mxu0 %v515
        %518 = vmatprep.subr.mxu0 0.0
        %519 = vmatpush1.msra.mxu0 %v514
        %520 = vmatprep.subr.mxu0 0.0
        %521 = vmatpush1.msra.mxu0 %v513
        %522 = vmatprep.subr.mxu0 0.0
        %523 = vmatpush1.msra.mxu0 %v512
        %524 = vmatprep.subr.mxu0 0.0
        %525 = vmatpush1.msra.mxu0 %v511
        %526 = vmatprep.subr.mxu0 0.0
        %527 = vmatpush1.msra.mxu0 %v510
        %528 = vmatprep.subr.mxu0 0.0
        %529 = vmatpush1.msra.mxu0 %v509
        %530 = vmatprep.subr.mxu0 0.0
        %531 = vmatpush1.msra.mxu0 %v508
        %532 = vmatprep.subr.mxu0 0.0
        %533 = vmatpush1.msra.mxu0 %v507
        %534 = vmatprep.subr.mxu0 0.0
        %535 = vmatpush1.msra.mxu0 %v506
        %536 = vmatprep.subr.mxu0 0.0
        %537 = vmatpush1.msra.mxu0 %v505
        %538 = vmatprep.subr.mxu0 0.0
        %539 = vmatpush1.msra.mxu0 %v504
        %540 = vmatprep.subr.mxu0 0.0
        %541 = vmatpush1.msra.mxu0 %v503
        %542 = vmatprep.subr.mxu0 0.0
        %543 = vmatpush1.msra.mxu0 %v502
        %544 = vmatprep.subr.mxu0 0.0
        %545 = vmatpush1.msra.mxu0 %v501
        %546 = vmatprep.subr.mxu0 0.0
        %547 = vmatpush1.msra.mxu0 %v500
        %548 = vmatprep.subr.mxu0 0.0
        %549 = vmatpush2.msra.mxu0 0.0
        %550 = vmatprep.subr.mxu0 0.0
        %551 = vmatpush2.msra.mxu0 0.0
        %552 = vmatprep.subr.mxu0 0.0
        %553 = vmatpush2.msra.mxu0 0.0
        %554 = vmatprep.subr.mxu0 0.0
        %555 = vmatpush2.msra.mxu0 0.0
        %556 = vmatprep.subr.mxu0 0.0
        %557 = vmatpush2.msra.mxu0 0.0
        %558 = vmatprep.subr.mxu0 0.0
        %559 = vmatpush2.msra.mxu0 0.0
        %560 = vmatprep.subr.mxu0 0.0
        %561 = vmatpush2.msra.mxu0 0.0
        %562 = vmatprep.subr.mxu0 0.0
        %563 = vmatpush2.msra.mxu0 0.0
        %564 = vmatprep.subr.mxu0 0.0
        %565 = vmatpush2.msra.mxu0 0.0
        %566 = vmatprep.subr.mxu0 0.0
        %567 = vmatpush2.msra.mxu0 0.0
        %568 = vmatprep.subr.mxu0 0.0
        %569 = vmatpush2.msra.mxu0 0.0
        %570 = vmatprep.subr.mxu0 0.0
        %571 = vmatpush2.msra.mxu0 0.0
        %572 = vmatprep.subr.mxu0 0.0
        %573 = vmatpush2.msra.mxu0 0.0
        %574 = vmatprep.subr.mxu0 0.0
        %575 = vmatpush2.msra.mxu0 0.0
        %576 = vmatprep.subr.mxu0 0.0
        %577 = vmatpush2.msra.mxu0 0.0
        %578 = vmatprep.subr.mxu0 0.0
        %579 = vmatpush2.msra.mxu0 0.0
        %580 = vmatprep.mubr.f32.mxu0 0.0
        %581 = vmatmul.mubr.f32.gmra.mxu0 %v499
        %v582 = vpop.f32.mrf.mxu0
        %v583 = vadd.f32 0.0, %v582
        %v584 = vpop.f32.mrf.mxu0
        %585 = vdwg.mxu0
        %vm586 = vcmask 261120
        %v587 = vsel %vm586, %v583, -inf
        %588 = vmax.xlane.f32.xlu0 %v587
        %v589 = vpop.xlane.xlu0 %588
        %v590 = vsub.f32 %v583, %v589
        %v591 = vmul.f32 %v590, 1.442695
        %v592 = vpow.pop %v591
        %v593 = vsel %vm586, %v592, 0.0
        %594 = vadd.xlane.f32.xlu0 %v593
        %v595 = vpop.xlane.xlu0 %594
        %v596 = vrcp.pop %v595
        %v597 = vmul.f32 %v592, %v596
        %v598 = vld [vmem:[%s1] sm:$0xff]
        %v599 = vld [vmem:[%s1 + $0x8] sm:$0xff]
        %v600 = vld [vmem:[%s1 + $0x10] sm:$0xff]
        %v601 = vld [vmem:[%s1 + $0x18] sm:$0xff]
        %v603 = vsel %vm586, %v597, 0
        %605 = vmatprep.subr.mxu0 0.0
        %606 = vmatpush1.msra.mxu0 0.0
        %607 = vmatprep.subr.mxu0 0.0
        %608 = vmatpush1.msra.mxu0 0.0
        %609 = vmatprep.subr.mxu0 0.0
        %610 = vmatpush1.msra.mxu0 0.0
        %611 = vmatprep.subr.mxu0 0.0
        %612 = vmatpush1.msra.mxu0 0.0
        %613 = vmatprep.subr.mxu0 0.0
        %614 = vmatpush1.msra.mxu0 0.0
        %615 = vmatprep.subr.mxu0 0.0
        %616 = vmatpush1.msra.mxu0 0.0
        %617 = vmatprep.subr.mxu0 0.0
        %618 = vmatpush1.msra.mxu0 0.0
        %619 = vmatprep.subr.mxu0 0.0
        %620 = vmatpush1.msra.mxu0 0.0
        %621 = vmatprep.subr.mxu0 0.0
        %622 = vmatpush1.msra.mxu0 0.0
        %623 = vmatprep.subr.mxu0 0.0
        %624 = vmatpush1.msra.mxu0 0.0
        %625 = vmatprep.subr.mxu0 0.0
        %626 = vmatpush1.msra.mxu0 0.0
        %627 = vmatprep.subr.mxu0 0.0
        %628 = vmatpush1.msra.mxu0 0.0
        %629 = vmatprep.subr.mxu0 0.0
        %630 = vmatpush1.msra.mxu0 %v601
        %631 = vmatprep.subr.mxu0 0.0
        %632 = vmatpush1.msra.mxu0 %v600
        %633 = vmatprep.subr.mxu0 0.0
        %634 = vmatpush1.msra.mxu0 %v599
        %635 = vmatprep.subr.mxu0 0.0
        %636 = vmatpush1.msra.mxu0 %v598
        %637 = vmatprep.subr.mxu0 0.0
        %638 = vmatpush2.msra.mxu0 0.0
        %639 = vmatprep.subr.mxu0 0.0
        %640 = vmatpush2.msra.mxu0 0.0
        %641 = vmatprep.subr.mxu0 0.0
        %642 = vmatpush2.msra.mxu0 0.0
        %643 = vmatprep.subr.mxu0 0.0
        %644 = vmatpush2.msra.mxu0 0.0
        %645 = vmatprep.subr.mxu0 0.0
        %646 = vmatpush2.msra.mxu0 0.0
        %647 = vmatprep.subr.mxu0 0.0
        %648 = vmatpush2.msra.mxu0 0.0
        %649 = vmatprep.subr.mxu0 0.0
        %650 = vmatpush2.msra.mxu0 0.0
        %651 = vmatprep.subr.mxu0 0.0
        %652 = vmatpush2.msra.mxu0 0.0
        %653 = vmatprep.subr.mxu0 0.0
        %654 = vmatpush2.msra.mxu0 0.0
        %655 = vmatprep.subr.mxu0 0.0
        %656 = vmatpush2.msra.mxu0 0.0
        %657 = vmatprep.subr.mxu0 0.0
        %658 = vmatpush2.msra.mxu0 0.0
        %659 = vmatprep.subr.mxu0 0.0
        %660 = vmatpush2.msra.mxu0 0.0
        %661 = vmatprep.subr.mxu0 0.0
        %662 = vmatpush2.msra.mxu0 0.0
        %663 = vmatprep.subr.mxu0 0.0
        %664 = vmatpush2.msra.mxu0 0.0
        %665 = vmatprep.subr.mxu0 0.0
        %666 = vmatpush2.msra.mxu0 0.0
        %667 = vmatprep.subr.mxu0 0.0
        %668 = vmatpush2.msra.mxu0 0.0
        %669 = vmatprep.mubr.f32.mxu0 0.0
        %670 = vmatmul.mubr.f32.gmra.mxu0 %v603
        %v671 = vpop.f32.mrf.mxu0
        %v672 = vadd.f32 0.0, %v671
        %v673 = vpop.f32.mrf.mxu0
        %674 = vdwg.mxu0
        %v675 = vadd.f32 %v499, %v672
        %v676 = vld [vmem:[#allocation4] sm:$0xff]
        %v677 = vld [vmem:[#allocation4 + $0x8] sm:$0xff]
        %v678 = vld [vmem:[#allocation4 + $0x10] sm:$0xff]
        %v679 = vld [vmem:[#allocation4 + $0x18] sm:$0xff]
        %v680 = vld [vmem:[%s4] sm:$0xff]
        %v681 = vld [vmem:[%s4 + $0x8] sm:$0xff]
        %v682 = vld [vmem:[%s4 + $0x10] sm:$0xff]
        %v683 = vld [vmem:[%s4 + $0x18] sm:$0xff]
        %v684 = vld [vmem:[%s4 + $0x20] sm:$0xff]
        %v685 = vld [vmem:[%s4 + $0x28] sm:$0xff]
        %v686 = vld [vmem:[%s4 + $0x30] sm:$0xff]
        %v687 = vld [vmem:[%s4 + $0x38] sm:$0xff]
        %v688 = vld [vmem:[%s4 + $0x40] sm:$0xff]
        %v689 = vld [vmem:[%s4 + $0x48] sm:$0xff]
        %v690 = vld [vmem:[%s4 + $0x50] sm:$0xff]
        %v691 = vld [vmem:[%s4 + $0x58] sm:$0xff]
        %v692 = vld [vmem:[%s4 + $0x60] sm:$0xff]
        %v693 = vld [vmem:[%s4 + $0x68] sm:$0xff]
        %v694 = vld [vmem:[%s4 + $0x70] sm:$0xff]
        %v695 = vld [vmem:[%s4 + $0x78] sm:$0xff]
        %v696 = vld [vmem:[%s4 + $0x80] sm:$0xff]
        %v697 = vld [vmem:[%s4 + $0x88] sm:$0xff]
        %v698 = vld [vmem:[%s4 + $0x90] sm:$0xff]
        %v699 = vld [vmem:[%s4 + $0x98] sm:$0xff]
        %v700 = vld [vmem:[%s4 + $0xa0] sm:$0xff]
        %v701 = vld [vmem:[%s4 + $0xa8] sm:$0xff]
        %v702 = vld [vmem:[%s4 + $0xb0] sm:$0xff]
        %v703 = vld [vmem:[%s4 + $0xb8] sm:$0xff]
        %v704 = vld [vmem:[%s4 + $0xc0] sm:$0xff]
        %v705 = vld [vmem:[%s4 + $0xc8] sm:$0xff]
        %v706 = vld [vmem:[%s4 + $0xd0] sm:$0xff]
        %v707 = vld [vmem:[%s4 + $0xd8] sm:$0xff]
        %v708 = vld [vmem:[%s4 + $0xe0] sm:$0xff]
        %v709 = vld [vmem:[%s4 + $0xe8] sm:$0xff]
        %v710 = vld [vmem:[%s4 + $0xf0] sm:$0xff]
        %v711 = vld [vmem:[%s4 + $0xf8] sm:$0xff]
        %v712 = vld [vmem:[%s4 + $0x100] sm:$0xff]
        %v713 = vld [vmem:[%s4 + $0x108] sm:$0xff]
        %v714 = vld [vmem:[%s4 + $0x110] sm:$0xff]
        %v715 = vld [vmem:[%s4 + $0x118] sm:$0xff]
        %v716 = vld [vmem:[%s4 + $0x120] sm:$0xff]
        %v717 = vld [vmem:[%s4 + $0x128] sm:$0xff]
        %v718 = vld [vmem:[%s4 + $0x130] sm:$0xff]
        %v719 = vld [vmem:[%s4 + $0x138] sm:$0xff]
        %v720 = vld [vmem:[%s4 + $0x140] sm:$0xff]
        %v721 = vld [vmem:[%s4 + $0x148] sm:$0xff]
        %v722 = vld [vmem:[%s4 + $0x150] sm:$0xff]
        %v723 = vld [vmem:[%s4 + $0x158] sm:$0xff]
        %v724 = vld [vmem:[%s4 + $0x160] sm:$0xff]
        %v725 = vld [vmem:[%s4 + $0x168] sm:$0xff]
        %v726 = vld [vmem:[%s4 + $0x170] sm:$0xff]
        %v727 = vld [vmem:[%s4 + $0x178] sm:$0xff]
        %v728 = vld [vmem:[%s4 + $0x180] sm:$0xff]
        %v729 = vld [vmem:[%s4 + $0x188] sm:$0xff]
        %v730 = vld [vmem:[%s4 + $0x190] sm:$0xff]
        %v731 = vld [vmem:[%s4 + $0x198] sm:$0xff]
        %v732 = vld [vmem:[%s4 + $0x1a0] sm:$0xff]
        %v733 = vld [vmem:[%s4 + $0x1a8] sm:$0xff]
        %v734 = vld [vmem:[%s4 + $0x1b0] sm:$0xff]
        %v735 = vld [vmem:[%s4 + $0x1b8] sm:$0xff]
        %v736 = vld [vmem:[%s4 + $0x1c0] sm:$0xff]
        %v737 = vld [vmem:[%s4 + $0x1c8] sm:$0xff]
        %v738 = vld [vmem:[%s4 + $0x1d0] sm:$0xff]
        %v739 = vld [vmem:[%s4 + $0x1d8] sm:$0xff]
        %v740 = vld [vmem:[%s4 + $0x1e0] sm:$0xff]
        %v741 = vld [vmem:[%s4 + $0x1e8] sm:$0xff]
        %v742 = vld [vmem:[%s4 + $0x1f0] sm:$0xff]
        %v743 = vld [vmem:[%s4 + $0x1f8] sm:$0xff]
        %744 = vmatprep.subr.mxu0 %v741
        %745 = vmatpush1.msra.mxu0 %v740
        %746 = vmatprep.subr.mxu0 %v737
        %747 = vmatpush1.msra.mxu0 %v736
        %748 = vmatprep.subr.mxu0 %v733
        %749 = vmatpush1.msra.mxu0 %v732
        %750 = vmatprep.subr.mxu0 %v729
        %751 = vmatpush1.msra.mxu0 %v728
        %752 = vmatprep.subr.mxu0 %v725
        %753 = vmatpush1.msra.mxu0 %v724
        %754 = vmatprep.subr.mxu0 %v721
        %755 = vmatpush1.msra.mxu0 %v720
        %756 = vmatprep.subr.mxu0 %v717
        %757 = vmatpush1.msra.mxu0 %v716
        %758 = vmatprep.subr.mxu0 %v713
        %759 = vmatpush1.msra.mxu0 %v712
        %760 = vmatprep.subr.mxu0 %v709
        %761 = vmatpush1.msra.mxu0 %v708
        %762 = vmatprep.subr.mxu0 %v705
        %763 = vmatpush1.msra.mxu0 %v704
        %764 = vmatprep.subr.mxu0 %v701
        %765 = vmatpush1.msra.mxu0 %v700
        %766 = vmatprep.subr.mxu0 %v697
        %767 = vmatpush1.msra.mxu0 %v696
        %768 = vmatprep.subr.mxu0 %v693
        %769 = vmatpush1.msra.mxu0 %v692
        %770 = vmatprep.subr.mxu0 %v689
        %771 = vmatpush1.msra.mxu0 %v688
        %772 = vmatprep.subr.mxu0 %v685
        %773 = vmatpush1.msra.mxu0 %v684
        %774 = vmatprep.subr.mxu0 %v681
        %775 = vmatpush1.msra.mxu0 %v680
        %776 = vmatprep.subr.mxu0 0.0
        %777 = vmatpush2.msra.mxu0 0.0
        %778 = vmatprep.subr.mxu0 0.0
        %779 = vmatpush2.msra.mxu0 0.0
        %780 = vmatprep.subr.mxu0 0.0
        %781 = vmatpush2.msra.mxu0 0.0
        %782 = vmatprep.subr.mxu0 0.0
        %783 = vmatpush2.msra.mxu0 0.0
        %784 = vmatprep.subr.mxu0 0.0
        %785 = vmatpush2.msra.mxu0 0.0
        %786 = vmatprep.subr.mxu0 0.0
        %787 = vmatpush2.msra.mxu0 0.0
        %788 = vmatprep.subr.mxu0 0.0
        %789 = vmatpush2.msra.mxu0 0.0
        %790 = vmatprep.subr.mxu0 0.0
        %791 = vmatpush2.msra.mxu0 0.0
        %792 = vmatprep.subr.mxu0 0.0
        %793 = vmatpush2.msra.mxu0 0.0
        %794 = vmatprep.subr.mxu0 0.0
        %795 = vmatpush2.msra.mxu0 0.0
        %796 = vmatprep.subr.mxu0 0.0
        %797 = vmatpush2.msra.mxu0 0.0
        %798 = vmatprep.subr.mxu0 0.0
        %799 = vmatpush2.msra.mxu0 0.0
        %800 = vmatprep.subr.mxu0 0.0
        %801 = vmatpush2.msra.mxu0 0.0
        %802 = vmatprep.subr.mxu0 0.0
        %803 = vmatpush2.msra.mxu0 0.0
        %804 = vmatprep.subr.mxu0 0.0
        %805 = vmatpush2.msra.mxu0 0.0
        %806 = vmatprep.subr.mxu0 0.0
        %807 = vmatpush2.msra.mxu0 0.0
        %808 = vmatprep.mubr.f32.mxu0 0.0
        %809 = vmatmul.mubr.f32.gmra.mxu0 %v675
        %v810 = vpop.f32.mrf.mxu0
        %v811 = vadd.f32 0.0, %v810
        %v812 = vpop.f32.mrf.mxu0
        %v813 = vadd.f32 0.0, %v812
        %814 = vdwg.mxu0
        %815 = vmatprep.subr.mxu0 %v743
        %816 = vmatpush1.msra.mxu0 %v742
        %817 = vmatprep.subr.mxu0 %v739
        %818 = vmatpush1.msra.mxu0 %v738
        %819 = vmatprep.subr.mxu0 %v735
        %820 = vmatpush1.msra.mxu0 %v734
        %821 = vmatprep.subr.mxu0 %v731
        %822 = vmatpush1.msra.mxu0 %v730
        %823 = vmatprep.subr.mxu0 %v727
        %824 = vmatpush1.msra.mxu0 %v726
        %825 = vmatprep.subr.mxu0 %v723
        %826 = vmatpush1.msra.mxu0 %v722
        %827 = vmatprep.subr.mxu0 %v719
        %828 = vmatpush1.msra.mxu0 %v718
        %829 = vmatprep.subr.mxu0 %v715
        %830 = vmatpush1.msra.mxu0 %v714
        %831 = vmatprep.subr.mxu0 %v711
        %832 = vmatpush1.msra.mxu0 %v710
        %833 = vmatprep.subr.mxu0 %v707
        %834 = vmatpush1.msra.mxu0 %v706
        %835 = vmatprep.subr.mxu0 %v703
        %836 = vmatpush1.msra.mxu0 %v702
        %837 = vmatprep.subr.mxu0 %v699
        %838 = vmatpush1.msra.mxu0 %v698
        %839 = vmatprep.subr.mxu0 %v695
        %840 = vmatpush1.msra.mxu0 %v694
        %841 = vmatprep.subr.mxu0 %v691
        %842 = vmatpush1.msra.mxu0 %v690
        %843 = vmatprep.subr.mxu0 %v687
        %844 = vmatpush1.msra.mxu0 %v686
        %845 = vmatprep.subr.mxu0 %v683
        %846 = vmatpush1.msra.mxu0 %v682
        %847 = vmatprep.subr.mxu0 0.0
        %848 = vmatpush2.msra.mxu0 0.0
        %849 = vmatprep.subr.mxu0 0.0
        %850 = vmatpush2.msra.mxu0 0.0
        %851 = vmatprep.subr.mxu0 0.0
        %852 = vmatpush2.msra.mxu0 0.0
        %853 = vmatprep.subr.mxu0 0.0
        %854 = vmatpush2.msra.mxu0 0.0
        %855 = vmatprep.subr.mxu0 0.0
        %856 = vmatpush2.msra.mxu0 0.0
        %857 = vmatprep.subr.mxu0 0.0
        %858 = vmatpush2.msra.mxu0 0.0
        %859 = vmatprep.subr.mxu0 0.0
        %860 = vmatpush2.msra.mxu0 0.0
        %861 = vmatprep.subr.mxu0 0.0
        %862 = vmatpush2.msra.mxu0 0.0
        %863 = vmatprep.subr.mxu0 0.0
        %864 = vmatpush2.msra.mxu0 0.0
        %865 = vmatprep.subr.mxu0 0.0
        %866 = vmatpush2.msra.mxu0 0.0
        %867 = vmatprep.subr.mxu0 0.0
        %868 = vmatpush2.msra.mxu0 0.0
        %869 = vmatprep.subr.mxu0 0.0
        %870 = vmatpush2.msra.mxu0 0.0
        %871 = vmatprep.subr.mxu0 0.0
        %872 = vmatpush2.msra.mxu0 0.0
        %873 = vmatprep.subr.mxu0 0.0
        %874 = vmatpush2.msra.mxu0 0.0
        %875 = vmatprep.subr.mxu0 0.0
        %876 = vmatpush2.msra.mxu0 0.0
        %877 = vmatprep.subr.mxu0 0.0
        %878 = vmatpush2.msra.mxu0 0.0
        %879 = vmatprep.mubr.f32.mxu0 0.0
        %880 = vmatmul.mubr.f32.gmra.mxu0 %v675
        %v881 = vpop.f32.mrf.mxu0
        %v882 = vadd.f32 0.0, %v881
        %v883 = vpop.f32.mrf.mxu0
        %v884 = vadd.f32 0.0, %v883
        %885 = vdwg.mxu0
        %v886 = vadd.f32 %v676, %v811
        %v887 = vadd.f32 %v677, %v813
        %v888 = vadd.f32 %v678, %v882
        %v889 = vadd.f32 %v679, %v884
        %v890 = vsub.f32 0.0, %v886
        %v891 = vmul.f32 %v890, 1.442695
        %v892 = vpow.pop %v891
        %v893 = vadd.f32 %v892, 1.0
        %v894 = vrcp.pop %v893
        %v895 = vmul.f32 1.0, %v894
        %v896 = vsub.f32 0.0, %v887
        %v897 = vmul.f32 %v896, 1.442695
        %v898 = vpow.pop %v897
        %v899 = vadd.f32 %v898, 1.0
        %v900 = vrcp.pop %v899
        %v901 = vmul.f32 1.0, %v900
        %v902 = vtanh.pop %v888
        %v903 = vsub.f32 0.0, %v889
        %v904 = vmul.f32 %v903, 1.442695
        %v905 = vpow.pop %v904
        %v906 = vadd.f32 %v905, 1.0
        %v907 = vrcp.pop %v906
        %v908 = vmul.f32 1.0, %v907
        %v909 = vld [vmem:[#allocation3] sm:$0xff]
        %v910 = vmul.f32 %v901, %v909
        %v911 = vmul.f32 %v895, %v902
        %v912 = vadd.f32 %v910, %v911
        %v913 = vtanh.pop %v912
        %v914 = vmul.f32 %v908, %v913
        %915 = vst [vmem:[#allocation3] sm:$0xff] %v912
        %916 = vst [vmem:[#allocation2] sm:$0xff] %v914
        %p917 = scmp.eq.s32.totalorder %s25, 1
        // Predicated region
        $region49: #{attention_lstm_forward.1} parent=43 // pred_check
          %p918 = pneg %p917
        $region50: #{attention_lstm_forward.1} parent=43 // pred_check_branch
          %920 = sbr.rel (%p918) target = $region52
        $region51: #{attention_lstm_forward.1} parent=43 // pred_region
          %v921 = vadd.f32 %v914, %v259
          %922 = vst [vmem:[%s254] sm:$0xff] %v921
        $region52: #{attention_lstm_forward.1} parent=43 // pred_fallthru
          _
        %s923 = sand.u32 %s171, 1
        %s924 = scalar_lea.sflag [#allocation6], %s923
        %s925 = sand.u32 %s171, 1
        %s926 = smul.addr %s925, 8
        %s927 = scalar_lea.vmem [#allocation5], %s926
        // Predicated region
        $region53: #{attention_lstm_forward.1} parent=43 // pred_check
          %p928 = pneg %p181
        $region54: #{attention_lstm_forward.1} parent=43 // pred_check_branch
          %930 = sbr.rel (%p928) target = $region56
        $region55: #{attention_lstm_forward.1} parent=43 // pred_region
          %s932 = ssub.s32 128, 128
          %933 = vsyncadd %s924, %s932
          %s934 = smul.addr %s24, 128
          %s935 = scalar_lea.hbm %s6, %s934
          %s937 = sshll.u32 %s927, 4
          %s938 = int_to_ptr.vmem [resolvable:$true] %s937
          %940 = dma.vmem_to_hbm [thread:$0]  %s938, 128, %s935, %s924
        $region56: #{attention_lstm_forward.1} parent=43 // pred_fallthru
          _
      $region44: #{attention_lstm_forward.1} parent=5 // pred_fallthru
        _
      %p941 = scmp.le.s32.totalorder 2, %s15
      // Predicated region
      $region57: #{attention_lstm_forward.1} parent=5 // pred_check
        %p942 = pneg %p941
      $region58: #{attention_lstm_forward.1} parent=5 // pred_check_branch
        %944 = sbr.rel (%p942) target = $region60
      $region59: #{attention_lstm_forward.1} parent=5 // pred_region
        %s945 = ssub.s32 %s15, 2
        // Predicated region
        $region61: #{attention_lstm_forward.1} parent=59 // pred_check
          %p946 = pneg %p187
        $region62: #{attention_lstm_forward.1} parent=59 // pred_check_branch
          %948 = sbr.rel (%p946) target = $region64
        $region63: #{attention_lstm_forward.1} parent=59 // pred_region
          %s949 = sand.u32 %s172, 1
          %s950 = scalar_lea.sflag [#allocation6], %s949
          %s951 = sand.u32 %s172, 1
          %s952 = smul.addr %s951, 8
          %s953 = scalar_lea.vmem [#allocation5], %s952
          %954 = dma.done %s950, 128
        $region64: #{attention_lstm_forward.1} parent=59 // pred_fallthru
          _
      $region60: #{attention_lstm_forward.1} parent=5 // pred_fallthru
        _
    $region6: #{attention_lstm_forward.1} parent=1 // loop_footer
      %s19 = sadd.s32 1, %s15
    $region7: #{attention_lstm_forward.1} parent=1 // loop_footer_branch
      %14 = sbr.rel target = $region3
    $region8: #{attention_lstm_forward.1} parent=1 // loop_exit
      _
    %955 = vsyncpa [#allocation6], 1
    %s956 = scalar_lea.sflag [#allocation6], 1
    %957 = vsyncpa %s956, 1

</llo_original>
